<compile_context>
chip_gen: v6e
topology: v6e:2x2x1
jax: 0.10.0
libtpu: 0.0.40
codegen_flags: <defaults>
</compile_context>

<pallas_src>
import functools
import math

import jax
import jax.numpy as jnp
from jax.experimental import pallas as pl
from jax.experimental.pallas import tpu as pltpu


def _qkv_attention_kernel(
    q_ref, k_ref, v_ref,
    wq_ref, bq_ref, wk_ref, bk_ref, wv_ref, bv_ref,
    o_ref,
    *, scale,
):
    # Block shapes: q (Bt, Sq, Dq), k/v (Bt, Sk, Dk/Dv); weights are full
    # (D_in, 128-padded D_out) arrays, biases (1, 128-padded D_out).
    Bt, Sq, Dq = q_ref.shape
    _, Sk, Dk = k_ref.shape
    _, _, Dv = v_ref.shape
    Hp = wq_ref.shape[1]
    Dop = wv_ref.shape[1]

    # Flatten batch x seq so each projection is a single lane-dense MXU matmul
    # (these reshapes only regroup sublane tiles; no data movement).
    q2 = q_ref[...].reshape(Bt * Sq, Dq)
    k2 = k_ref[...].reshape(Bt * Sk, Dk)
    v2 = v_ref[...].reshape(Bt * Sk, Dv)

    # Linear projections (f32 accumulation).  Scale folded into lq (applies to
    # the whole dot product, bias included, so it's exactly score/sqrt(H)).
    lq = (jnp.dot(q2, wq_ref[...], preferred_element_type=jnp.float32)
          + bq_ref[...]) * scale
    lk = jnp.dot(k2, wk_ref[...], preferred_element_type=jnp.float32) + bk_ref[...]
    lv = jnp.dot(v2, wv_ref[...], preferred_element_type=jnp.float32) + bv_ref[...]

    lq = lq.reshape(Bt, Sq, Hp)
    lk = lk.reshape(Bt, Sk, Hp)
    lv = lv.reshape(Bt, Sk, Dop)

    # Scores: batched contraction over the (padded) hidden axis — no explicit
    # transpose of lk (padded columns are exactly zero, so they contribute 0).
    scores = jnp.einsum("bqh,bkh->bqk", lq, lk,
                        preferred_element_type=jnp.float32)     # (Bt, Sq, Sk)

    # Numerically-stable softmax over keys; reciprocal on the EUP slot.
    scores = scores - jnp.max(scores, axis=-1, keepdims=True)
    p = jnp.exp(scores)
    p = p * pl.reciprocal(jnp.sum(p, axis=-1, keepdims=True), approx=True)

    # Attention-weighted values (padded output columns stay exactly zero).
    out = jnp.einsum("bqk,bkd->bqd", p, lv,
                     preferred_element_type=jnp.float32)        # (Bt, Sq, Dop)

    # TODO(synk): dropout is identity here (eval-mode semantics); training-mode
    # dropout would use pltpu.prng_seed / pltpu.stateful_bernoulli.
    o_ref[...] = out.astype(o_ref.dtype)


def qkv_attention(input_query, input_key, input_value, params, hidden_dim):
    """params: wq (Dq,H), bq (H,), wk (Dk,H), bk (H,), wv (Dv,Do), bv (Do,)."""
    B, Sq, Dq = input_query.shape
    _, Sk, Dk = input_key.shape
    _, _, Dv = input_value.shape
    H = params["wq"].shape[1]
    Do = params["wv"].shape[1]

    # Pad projection output dims to the 128-lane vreg width so every matmul
    # and the output store are lane-dense (padding is zeros -> exact math).
    LANE = 128
    Hp = pl.cdiv(H, LANE) * LANE
    Dop = pl.cdiv(Do, LANE) * LANE

    wq = jnp.pad(params["wq"], ((0, 0), (0, Hp - H)))
    wk = jnp.pad(params["wk"], ((0, 0), (0, Hp - H)))
    wv = jnp.pad(params["wv"], ((0, 0), (0, Dop - Do)))
    bq = jnp.pad(params["bq"], (0, Hp - H)).reshape(1, Hp)
    bk = jnp.pad(params["bk"], (0, Hp - H)).reshape(1, Hp)
    bv = jnp.pad(params["bv"], (0, Dop - Do)).reshape(1, Dop)

    # Whole batch in a single grid step at these sizes: amortizes the
    # ~0.35 us/step pipeline overhead that dominated the per-batch grid.
    # (For large B / long sequences, shrink Bt and/or add a Q-tile axis with a
    # flash-style online-softmax inner loop and K-tiled weights.)
    Bt = B
    grid = (B // Bt,)

    kernel = functools.partial(_qkv_attention_kernel,
                               scale=1.0 / math.sqrt(hidden_dim))

    full2d = lambda shape: pl.BlockSpec(shape, lambda b: (0, 0))

    out_padded = pl.pallas_call(
        kernel,
        out_shape=jax.ShapeDtypeStruct((B, Sq, Dop), input_query.dtype),
        grid_spec=pltpu.PrefetchScalarGridSpec(
            num_scalar_prefetch=0,
            grid=grid,
            in_specs=[
                pl.BlockSpec((Bt, Sq, Dq), lambda b: (b, 0, 0)),
                pl.BlockSpec((Bt, Sk, Dk), lambda b: (b, 0, 0)),
                pl.BlockSpec((Bt, Sk, Dv), lambda b: (b, 0, 0)),
                full2d((Dq, Hp)), full2d((1, Hp)),
                full2d((Dk, Hp)), full2d((1, Hp)),
                full2d((Dv, Dop)), full2d((1, Dop)),
            ],
            out_specs=pl.BlockSpec((Bt, Sq, Dop), lambda b: (b, 0, 0)),
        ),
        compiler_params=pltpu.CompilerParams(
            dimension_semantics=("parallel",)),
    )(input_query, input_key, input_value, wq, bq, wk, bk, wv, bv)

    # Drop the lane padding on the output feature dim.
    return out_padded[:, :, :Do]


def _reference(input_query, input_key, input_value, params, hidden_dim):
    lq = input_query @ params["wq"] + params["bq"]
    lk = input_key @ params["wk"] + params["bk"]
    lv = input_value @ params["wv"] + params["bv"]
    s = jnp.einsum("bqh,bkh->bqk", lq, lk) / math.sqrt(hidden_dim)
    p = jax.nn.softmax(s, axis=-1)
    return jnp.einsum("bqk,bkd->bqd", p, lv)


if __name__ == "__main__":
    # Module config (small, consistent with the forward pass).
    B, Sq, Sk = 2, 8, 8
    query_dim, key_dim, value_dim = 16, 16, 16
    hidden_dim, output_dim = 32, 32
    dropout_rate = 0.1  # identity at inference

    key = jax.random.PRNGKey(0)
    keys = jax.random.split(key, 9)

    # Deterministic parameter init (nn.Linear weight (out,in) stored transposed
    # as (in,out), bias (out,)).
    params = {
        "wq": jax.random.normal(keys[0], (query_dim, hidden_dim), jnp.float32) * 0.1,
        "bq": jax.random.normal(keys[1], (hidden_dim,), jnp.float32) * 0.1,
        "wk": jax.random.normal(keys[2], (key_dim, hidden_dim), jnp.float32) * 0.1,
        "bk": jax.random.normal(keys[3], (hidden_dim,), jnp.float32) * 0.1,
        "wv": jax.random.normal(keys[4], (value_dim, output_dim), jnp.float32) * 0.1,
        "bv": jax.random.normal(keys[5], (output_dim,), jnp.float32) * 0.1,
    }

    input_query = jax.random.normal(keys[6], (B, Sq, query_dim), jnp.float32)
    input_key = jax.random.normal(keys[7], (B, Sk, key_dim), jnp.float32)
    input_value = jax.random.normal(keys[8], (B, Sk, value_dim), jnp.float32)

    out = qkv_attention(input_query, input_key, input_value, params, hidden_dim)
    out = jax.block_until_ready(out)

    ref = _reference(input_query, input_key, input_value, params, hidden_dim)
    assert out.shape == (B, Sq, output_dim)
    # Tolerance relaxed slightly vs exact-reciprocal version: softmax denom
    # uses the EUP approximate reciprocal.
    assert jnp.allclose(out, ref, atol=5e-3, rtol=5e-3), float(
        jnp.max(jnp.abs(out - ref)))

    print("KERNEL_OK")
</pallas_src>

<mosaic_0001>
module attributes {stable_mosaic.version = 11 : i64} {
  func.func @_qkv_attention_kernel(%arg0: i32, %arg1: memref<2x8x16xf32, #tpu.memory_space<vmem>>, %arg2: memref<2x8x16xf32, #tpu.memory_space<vmem>>, %arg3: memref<2x8x16xf32, #tpu.memory_space<vmem>>, %arg4: memref<16x128xf32, #tpu.memory_space<vmem>>, %arg5: memref<1x128xf32, #tpu.memory_space<vmem>>, %arg6: memref<16x128xf32, #tpu.memory_space<vmem>>, %arg7: memref<1x128xf32, #tpu.memory_space<vmem>>, %arg8: memref<16x128xf32, #tpu.memory_space<vmem>>, %arg9: memref<1x128xf32, #tpu.memory_space<vmem>>, %arg10: memref<2x8x128xf32, #tpu.memory_space<vmem>>) attributes {dimension_semantics = [#tpu.dimension_semantics<parallel>], iteration_bounds = array<i64: 1>, scalar_prefetch = 0 : i64, scratch_operands = 0 : i64, tpu.core_type = #tpu.core_type<tc>, window_params = [{transform_indices = @transform_0, window_bounds = array<i64: 2, 8, 16>}, {transform_indices = @transform_1, window_bounds = array<i64: 2, 8, 16>}, {transform_indices = @transform_2, window_bounds = array<i64: 2, 8, 16>}, {pipeline_mode = #tpu.pipeline_mode<synchronous>, transform_indices = @transform_3, window_bounds = array<i64: 16, 128>}, {pipeline_mode = #tpu.pipeline_mode<synchronous>, transform_indices = @transform_4, window_bounds = array<i64: 1, 128>}, {pipeline_mode = #tpu.pipeline_mode<synchronous>, transform_indices = @transform_5, window_bounds = array<i64: 16, 128>}, {pipeline_mode = #tpu.pipeline_mode<synchronous>, transform_indices = @transform_6, window_bounds = array<i64: 1, 128>}, {pipeline_mode = #tpu.pipeline_mode<synchronous>, transform_indices = @transform_7, window_bounds = array<i64: 16, 128>}, {pipeline_mode = #tpu.pipeline_mode<synchronous>, transform_indices = @transform_8, window_bounds = array<i64: 1, 128>}, {transform_indices = @transform_9, window_bounds = array<i64: 2, 8, 128>}]} {
    %c0 = arith.constant 0 : index
    %c0_0 = arith.constant 0 : index
    %c0_1 = arith.constant 0 : index
    %0 = vector.load %arg1[%c0, %c0_0, %c0_1] : memref<2x8x16xf32, #tpu.memory_space<vmem>>, vector<2x8x16xf32>
    %1 = vector.shape_cast %0 : vector<2x8x16xf32> to vector<16x16xf32>
    %c0_2 = arith.constant 0 : index
    %c0_3 = arith.constant 0 : index
    %c0_4 = arith.constant 0 : index
    %2 = vector.load %arg2[%c0_2, %c0_3, %c0_4] : memref<2x8x16xf32, #tpu.memory_space<vmem>>, vector<2x8x16xf32>
    %3 = vector.shape_cast %2 : vector<2x8x16xf32> to vector<16x16xf32>
    %c0_5 = arith.constant 0 : index
    %c0_6 = arith.constant 0 : index
    %c0_7 = arith.constant 0 : index
    %4 = vector.load %arg3[%c0_5, %c0_6, %c0_7] : memref<2x8x16xf32, #tpu.memory_space<vmem>>, vector<2x8x16xf32>
    %5 = vector.shape_cast %4 : vector<2x8x16xf32> to vector<16x16xf32>
    %c0_8 = arith.constant 0 : index
    %c0_9 = arith.constant 0 : index
    %6 = vector.load %arg4[%c0_8, %c0_9] : memref<16x128xf32, #tpu.memory_space<vmem>>, vector<16x128xf32>
    %cst = arith.constant dense<0.000000e+00> : vector<16x128xf32>
    %7 = tpu.matmul %1, %6, %cst {dimension_numbers = #tpu.dot_dimension_numbers<[1], [0], [0], [1], [0, 0, 1, 1], [], []>} : vector<16x16xf32>, vector<16x128xf32>, vector<16x128xf32> -> vector<16x128xf32>
    %c0_10 = arith.constant 0 : index
    %c0_11 = arith.constant 0 : index
    %8 = vector.load %arg5[%c0_10, %c0_11] : memref<1x128xf32, #tpu.memory_space<vmem>>, vector<1x128xf32>
    %9 = vector.broadcast %8 : vector<1x128xf32> to vector<16x128xf32>
    %10 = arith.addf %7, %9 : vector<16x128xf32>
    %cst_12 = arith.constant 0.176776692 : f32
    %11 = vector.broadcast %cst_12 : f32 to vector<16x128xf32>
    %12 = arith.mulf %10, %11 : vector<16x128xf32>
    %c0_13 = arith.constant 0 : index
    %c0_14 = arith.constant 0 : index
    %13 = vector.load %arg6[%c0_13, %c0_14] : memref<16x128xf32, #tpu.memory_space<vmem>>, vector<16x128xf32>
    %cst_15 = arith.constant dense<0.000000e+00> : vector<16x128xf32>
    %14 = tpu.matmul %3, %13, %cst_15 {dimension_numbers = #tpu.dot_dimension_numbers<[1], [0], [0], [1], [0, 0, 1, 1], [], []>} : vector<16x16xf32>, vector<16x128xf32>, vector<16x128xf32> -> vector<16x128xf32>
    %c0_16 = arith.constant 0 : index
    %c0_17 = arith.constant 0 : index
    %15 = vector.load %arg7[%c0_16, %c0_17] : memref<1x128xf32, #tpu.memory_space<vmem>>, vector<1x128xf32>
    %16 = vector.broadcast %15 : vector<1x128xf32> to vector<16x128xf32>
    %17 = arith.addf %14, %16 : vector<16x128xf32>
    %c0_18 = arith.constant 0 : index
    %c0_19 = arith.constant 0 : index
    %18 = vector.load %arg8[%c0_18, %c0_19] : memref<16x128xf32, #tpu.memory_space<vmem>>, vector<16x128xf32>
    %cst_20 = arith.constant dense<0.000000e+00> : vector<16x128xf32>
    %19 = tpu.matmul %5, %18, %cst_20 {dimension_numbers = #tpu.dot_dimension_numbers<[1], [0], [0], [1], [0, 0, 1, 1], [], []>} : vector<16x16xf32>, vector<16x128xf32>, vector<16x128xf32> -> vector<16x128xf32>
    %c0_21 = arith.constant 0 : index
    %c0_22 = arith.constant 0 : index
    %20 = vector.load %arg9[%c0_21, %c0_22] : memref<1x128xf32, #tpu.memory_space<vmem>>, vector<1x128xf32>
    %21 = vector.broadcast %20 : vector<1x128xf32> to vector<16x128xf32>
    %22 = arith.addf %19, %21 : vector<16x128xf32>
    %23 = vector.shape_cast %12 : vector<16x128xf32> to vector<2x8x128xf32>
    %24 = vector.shape_cast %17 : vector<16x128xf32> to vector<2x8x128xf32>
    %25 = vector.shape_cast %22 : vector<16x128xf32> to vector<2x8x128xf32>
    "tpu.trace_start"() <{level = 10 : i32, message = "bqh,bkh->bqk"}> : () -> ()
    %cst_23 = arith.constant dense<0.000000e+00> : vector<2x8x8xf32>
    %26 = tpu.matmul %23, %24, %cst_23 {dimension_numbers = #tpu.dot_dimension_numbers<[2], [2], [1], [1], [0, 0, 0, 1, 1, 1], [0], [0]>} : vector<2x8x128xf32>, vector<2x8x128xf32>, vector<2x8x8xf32> -> vector<2x8x8xf32>
    "tpu.trace_stop"() : () -> ()
    %cst_24 = arith.constant dense<0xFF800000> : vector<2x8xf32>
    %27 = vector.multi_reduction <maximumf>, %26, %cst_24 [2] : vector<2x8x8xf32> to vector<2x8xf32>
    %28 = vector.shape_cast %27 : vector<2x8xf32> to vector<2x8x1xf32>
    %29 = vector.broadcast %28 : vector<2x8x1xf32> to vector<2x8x8xf32>
    %30 = arith.subf %26, %29 : vector<2x8x8xf32>
    %31 = math.exp %30 : vector<2x8x8xf32>
    %cst_25 = arith.constant dense<0.000000e+00> : vector<2x8xf32>
    %32 = vector.multi_reduction <add>, %31, %cst_25 [2] : vector<2x8x8xf32> to vector<2x8xf32>
    %33 = vector.shape_cast %32 : vector<2x8xf32> to vector<2x8x1xf32>
    %34 = tpu.reciprocal %33 {approx = true} : vector<2x8x1xf32> -> vector<2x8x1xf32>
    %35 = vector.broadcast %34 : vector<2x8x1xf32> to vector<2x8x8xf32>
    %36 = arith.mulf %31, %35 : vector<2x8x8xf32>
    "tpu.trace_start"() <{level = 10 : i32, message = "bqk,bkd->bqd"}> : () -> ()
    %cst_26 = arith.constant dense<0.000000e+00> : vector<2x8x128xf32>
    %37 = tpu.matmul %36, %25, %cst_26 {dimension_numbers = #tpu.dot_dimension_numbers<[2], [1], [1], [2], [0, 0, 0, 1, 1, 2], [0], [0]>} : vector<2x8x8xf32>, vector<2x8x128xf32>, vector<2x8x128xf32> -> vector<2x8x128xf32>
    "tpu.trace_stop"() : () -> ()
    %c0_27 = arith.constant 0 : index
    %c0_28 = arith.constant 0 : index
    %c0_29 = arith.constant 0 : index
    %38 = vector.load %arg10[%c0_27, %c0_28, %c0_29] : memref<2x8x128xf32, #tpu.memory_space<vmem>>, vector<2x8x128xf32>
    tpu.vector_store %arg10[%c0_27, %c0_28, %c0_29], %37 {strides = array<i32>} : memref<2x8x128xf32, #tpu.memory_space<vmem>>, vector<2x8x128xf32>,
    return
  }
  func.func @transform_0(%arg0: i32) -> (i32, i32, i32) {
    %c0_i32 = arith.constant 0 : i32
    %c0_i32_0 = arith.constant 0 : i32
    %c0_i32_1 = arith.constant 0 : i32
    return %arg0, %c0_i32, %c0_i32_0 : i32, i32, i32
  }
  func.func @transform_1(%arg0: i32) -> (i32, i32, i32) {
    %c0_i32 = arith.constant 0 : i32
    %c0_i32_0 = arith.constant 0 : i32
    %c0_i32_1 = arith.constant 0 : i32
    return %arg0, %c0_i32, %c0_i32_0 : i32, i32, i32
  }
  func.func @transform_2(%arg0: i32) -> (i32, i32, i32) {
    %c0_i32 = arith.constant 0 : i32
    %c0_i32_0 = arith.constant 0 : i32
    %c0_i32_1 = arith.constant 0 : i32
    return %arg0, %c0_i32, %c0_i32_0 : i32, i32, i32
  }
  func.func @transform_3(%arg0: i32) -> (i32, i32) {
    %c0_i32 = arith.constant 0 : i32
    %c0_i32_0 = arith.constant 0 : i32
    %c0_i32_1 = arith.constant 0 : i32
    return %c0_i32, %c0_i32_0 : i32, i32
  }
  func.func @transform_4(%arg0: i32) -> (i32, i32) {
    %c0_i32 = arith.constant 0 : i32
    %c0_i32_0 = arith.constant 0 : i32
    %c0_i32_1 = arith.constant 0 : i32
    return %c0_i32, %c0_i32_0 : i32, i32
  }
  func.func @transform_5(%arg0: i32) -> (i32, i32) {
    %c0_i32 = arith.constant 0 : i32
    %c0_i32_0 = arith.constant 0 : i32
    %c0_i32_1 = arith.constant 0 : i32
    return %c0_i32, %c0_i32_0 : i32, i32
  }
  func.func @transform_6(%arg0: i32) -> (i32, i32) {
    %c0_i32 = arith.constant 0 : i32
    %c0_i32_0 = arith.constant 0 : i32
    %c0_i32_1 = arith.constant 0 : i32
    return %c0_i32, %c0_i32_0 : i32, i32
  }
  func.func @transform_7(%arg0: i32) -> (i32, i32) {
    %c0_i32 = arith.constant 0 : i32
    %c0_i32_0 = arith.constant 0 : i32
    %c0_i32_1 = arith.constant 0 : i32
    return %c0_i32, %c0_i32_0 : i32, i32
  }
  func.func @transform_8(%arg0: i32) -> (i32, i32) {
    %c0_i32 = arith.constant 0 : i32
    %c0_i32_0 = arith.constant 0 : i32
    %c0_i32_1 = arith.constant 0 : i32
    return %c0_i32, %c0_i32_0 : i32, i32
  }
  func.func @transform_9(%arg0: i32) -> (i32, i32, i32) {
    %c0_i32 = arith.constant 0 : i32
    %c0_i32_0 = arith.constant 0 : i32
    %c0_i32_1 = arith.constant 0 : i32
    return %arg0, %c0_i32, %c0_i32_0 : i32, i32, i32
  }
}

</mosaic_0001>

<llo_original>
// kernel: tpu_custom_call.1
$region0: #{tpu_custom_call.1}
  #allocation0 [shape = 'u32[]', space=smem, size = 0x4, offset = 0x4, fixed_abs, tag = 'smem constant byte address 0x4 - core index']
  #allocation1 [shape = 'u32[144,128]{1,0:T(1,128)}', space=vmem, size = 0x12000, scoped, tag = 'internal scratch']
  %s0 = inlined_call_operand.hbm [shape: f32[2,8,16], index: 0, kind: input, shape index: {}]
  %s1 = inlined_call_operand.hbm [shape: f32[2,8,16], index: 1, kind: input, shape index: {}]
  %s2 = inlined_call_operand.hbm [shape: f32[2,8,16], index: 2, kind: input, shape index: {}]
  %s3 = inlined_call_operand.hbm [shape: f32[16,128], index: 3, kind: input, shape index: {}]
  %s4 = inlined_call_operand.vmem [shape: f32[1,128], index: 4, kind: input, shape index: {}]
  %s5 = inlined_call_operand.hbm [shape: f32[16,128], index: 5, kind: input, shape index: {}]
  %s6 = inlined_call_operand.vmem [shape: f32[1,128], index: 6, kind: input, shape index: {}]
  %s7 = inlined_call_operand.hbm [shape: f32[16,128], index: 7, kind: input, shape index: {}]
  %s8 = inlined_call_operand.vmem [shape: f32[1,128], index: 8, kind: input, shape index: {}]
  %s9 = inlined_call_operand.hbm [shape: f32[2,8,128], index: 9, kind: output, shape index: {}]
  %s10 = sld [smem:[#allocation0]]
  $region70: #{tpu_custom_call.1} parent=0
    _
  %s12 = ssub.s32 1, %s10
  %s13 = scalar_select 0, %s12, %s10
  $region1: #{tpu_custom_call.1} parent=0
    #allocation2 [shape = 'u8[8192]{0}', space=vmem, size = 0x2000, scoped, tag = 'input window, operand 0, single buffered']
    #allocation3 [shape = 's32[1]{0}', space=sflag, size = 0x4, scoped, tag = 'scoped memory for tpu_custom_call.1']
    #allocation4 [shape = 's32[1]{0}', space=sflag, size = 0x4, scoped, tag = 'scoped memory for tpu_custom_call.1']
    #allocation5 [shape = 'u8[8192]{0}', space=vmem, size = 0x2000, scoped, tag = 'input window, operand 1, single buffered']
    #allocation6 [shape = 's32[1]{0}', space=sflag, size = 0x4, scoped, tag = 'scoped memory for tpu_custom_call.1']
    #allocation7 [shape = 'u8[8192]{0}', space=vmem, size = 0x2000, scoped, tag = 'input window, operand 2, single buffered']
    #allocation8 [shape = 'u8[8192]{0}', space=vmem, size = 0x2000, scoped, tag = 'input window, operand 3, single buffered']
    #allocation9 [shape = 's32[1]{0}', space=sflag, size = 0x4, scoped, tag = 'scoped memory for tpu_custom_call.1']
    #allocation10 [shape = 'u8[8192]{0}', space=vmem, size = 0x2000, scoped, tag = 'input window, operand 5, single buffered']
    #allocation11 [shape = 'u8[8192]{0}', space=vmem, size = 0x2000, scoped, tag = 'input window, operand 7, single buffered']
    #allocation12 [shape = 's32[1]{0}', space=sflag, size = 0x4, scoped, tag = 'scoped memory for tpu_custom_call.1']
    #allocation13 [shape = 'u8[8192]{0}', space=vmem, size = 0x2000, scoped, tag = 'output window, operand 0, single buffered']
    %14 = vsyncpa [#allocation3], 0
    %15 = vsyncpa [#allocation6], 0
    %16 = vsyncpa [#allocation9], 0
    %17 = vsyncpa [#allocation12], 0
    %18 = vsyncpa [#allocation4], 0
    // Predicated region
    $region2: #{tpu_custom_call.1} parent=1 // pred_check
      _
    $region3: #{tpu_custom_call.1} parent=1 // pred_check_branch
      %20 = sbr.rel (0) target = $region5
    $region4: #{tpu_custom_call.1} parent=1 // pred_region
      %s22 = ssub.s32 256, 256
      %23 = vsyncadd [#allocation3], %s22
      %s24 = sshll.u32 [#allocation2], 4
      %s25 = int_to_ptr.vmem [resolvable:$true] %s24
      %30 = dma.hbm_to_vmem [thread:$0]  %s0, 256, %s25, [#allocation3], 128, 128, 8
    $region5: #{tpu_custom_call.1} parent=1 // pred_fallthru
      _
    // Predicated region
    $region6: #{tpu_custom_call.1} parent=1 // pred_check
      _
    $region7: #{tpu_custom_call.1} parent=1 // pred_check_branch
      %32 = sbr.rel (0) target = $region9
    $region8: #{tpu_custom_call.1} parent=1 // pred_region
      %s34 = ssub.s32 256, 256
      %35 = vsyncadd [#allocation6], %s34
      %s36 = sshll.u32 [#allocation5], 4
      %s37 = int_to_ptr.vmem [resolvable:$true] %s36
      %42 = dma.hbm_to_vmem [thread:$0]  %s1, 256, %s37, [#allocation6], 128, 128, 8
    $region9: #{tpu_custom_call.1} parent=1 // pred_fallthru
      _
    // Predicated region
    $region10: #{tpu_custom_call.1} parent=1 // pred_check
      _
    $region11: #{tpu_custom_call.1} parent=1 // pred_check_branch
      %44 = sbr.rel (0) target = $region13
    $region12: #{tpu_custom_call.1} parent=1 // pred_region
      %s46 = ssub.s32 256, 256
      %47 = vsyncadd [#allocation6], %s46
      %s48 = sshll.u32 [#allocation7], 4
      %s49 = int_to_ptr.vmem [resolvable:$true] %s48
      %54 = dma.hbm_to_vmem [thread:$0]  %s2, 256, %s49, [#allocation6], 128, 128, 8
    $region13: #{tpu_custom_call.1} parent=1 // pred_fallthru
      _
    // Predicated region
    $region14: #{tpu_custom_call.1} parent=1 // pred_check
      _
    $region15: #{tpu_custom_call.1} parent=1 // pred_check_branch
      %56 = sbr.rel (0) target = $region17
    $region16: #{tpu_custom_call.1} parent=1 // pred_region
      %s58 = ssub.s32 256, 256
      %59 = vsyncadd [#allocation9], %s58
      %s60 = sshll.u32 [#allocation8], 4
      %s61 = int_to_ptr.vmem [resolvable:$true] %s60
      %66 = dma.hbm_to_vmem [thread:$0]  %s3, 256, %s61, [#allocation9], 128, 128, 8
    $region17: #{tpu_custom_call.1} parent=1 // pred_fallthru
      _
    // Predicated region
    $region18: #{tpu_custom_call.1} parent=1 // pred_check
      _
    $region19: #{tpu_custom_call.1} parent=1 // pred_check_branch
      %68 = sbr.rel (0) target = $region21
    $region20: #{tpu_custom_call.1} parent=1 // pred_region
      _
    $region21: #{tpu_custom_call.1} parent=1 // pred_fallthru
      _
    // Predicated region
    $region22: #{tpu_custom_call.1} parent=1 // pred_check
      _
    $region23: #{tpu_custom_call.1} parent=1 // pred_check_branch
      %70 = sbr.rel (0) target = $region25
    $region24: #{tpu_custom_call.1} parent=1 // pred_region
      %s72 = ssub.s32 256, 256
      %73 = vsyncadd [#allocation9], %s72
      %s74 = sshll.u32 [#allocation10], 4
      %s75 = int_to_ptr.vmem [resolvable:$true] %s74
      %80 = dma.hbm_to_vmem [thread:$0]  %s5, 256, %s75, [#allocation9], 128, 128, 8
    $region25: #{tpu_custom_call.1} parent=1 // pred_fallthru
      _
    // Predicated region
    $region26: #{tpu_custom_call.1} parent=1 // pred_check
      _
    $region27: #{tpu_custom_call.1} parent=1 // pred_check_branch
      %82 = sbr.rel (0) target = $region29
    $region28: #{tpu_custom_call.1} parent=1 // pred_region
      _
    $region29: #{tpu_custom_call.1} parent=1 // pred_fallthru
      _
    // Predicated region
    $region30: #{tpu_custom_call.1} parent=1 // pred_check
      _
    $region31: #{tpu_custom_call.1} parent=1 // pred_check_branch
      %84 = sbr.rel (0) target = $region33
    $region32: #{tpu_custom_call.1} parent=1 // pred_region
      %s86 = ssub.s32 256, 256
      %87 = vsyncadd [#allocation12], %s86
      %s88 = sshll.u32 [#allocation11], 4
      %s89 = int_to_ptr.vmem [resolvable:$true] %s88
      %94 = dma.hbm_to_vmem [thread:$0]  %s7, 256, %s89, [#allocation12], 128, 128, 8
    $region33: #{tpu_custom_call.1} parent=1 // pred_fallthru
      _
    // Predicated region
    $region34: #{tpu_custom_call.1} parent=1 // pred_check
      _
    $region35: #{tpu_custom_call.1} parent=1 // pred_check_branch
      %96 = sbr.rel (0) target = $region37
    $region36: #{tpu_custom_call.1} parent=1 // pred_region
      _
    $region37: #{tpu_custom_call.1} parent=1 // pred_fallthru
      _
    // Predicated region
    $region38: #{tpu_custom_call.1} parent=1 // pred_check
      _
    $region39: #{tpu_custom_call.1} parent=1 // pred_check_branch
      %98 = sbr.rel (0) target = $region41
    $region40: #{tpu_custom_call.1} parent=1 // pred_region
      %99 = dma.done [#allocation3], 256
    $region41: #{tpu_custom_call.1} parent=1 // pred_fallthru
      _
    // Predicated region
    $region42: #{tpu_custom_call.1} parent=1 // pred_check
      _
    $region43: #{tpu_custom_call.1} parent=1 // pred_check_branch
      %101 = sbr.rel (0) target = $region45
    $region44: #{tpu_custom_call.1} parent=1 // pred_region
      %102 = dma.done [#allocation6], 256
    $region45: #{tpu_custom_call.1} parent=1 // pred_fallthru
      _
    // Predicated region
    $region46: #{tpu_custom_call.1} parent=1 // pred_check
      _
    $region47: #{tpu_custom_call.1} parent=1 // pred_check_branch
      %104 = sbr.rel (0) target = $region49
    $region48: #{tpu_custom_call.1} parent=1 // pred_region
      %105 = dma.done [#allocation6], 256
    $region49: #{tpu_custom_call.1} parent=1 // pred_fallthru
      _
    // Predicated region
    $region50: #{tpu_custom_call.1} parent=1 // pred_check
      _
    $region51: #{tpu_custom_call.1} parent=1 // pred_check_branch
      %107 = sbr.rel (0) target = $region53
    $region52: #{tpu_custom_call.1} parent=1 // pred_region
      %108 = dma.done [#allocation9], 256
    $region53: #{tpu_custom_call.1} parent=1 // pred_fallthru
      _
    // Predicated region
    $region54: #{tpu_custom_call.1} parent=1 // pred_check
      _
    $region55: #{tpu_custom_call.1} parent=1 // pred_check_branch
      %110 = sbr.rel (0) target = $region57
    $region56: #{tpu_custom_call.1} parent=1 // pred_region
      %111 = dma.done [#allocation9], 256
    $region57: #{tpu_custom_call.1} parent=1 // pred_fallthru
      _
    // Predicated region
    $region58: #{tpu_custom_call.1} parent=1 // pred_check
      _
    $region59: #{tpu_custom_call.1} parent=1 // pred_check_branch
      %113 = sbr.rel (0) target = $region61
    $region60: #{tpu_custom_call.1} parent=1 // pred_region
      %114 = dma.done [#allocation12], 256
    $region61: #{tpu_custom_call.1} parent=1 // pred_fallthru
      _
    %v115 = vld [vmem:[#allocation2] sm:$0xff]
    %v116 = vld [vmem:[#allocation2 + $0x8] sm:$0xff]
    %v117 = vld [vmem:[#allocation5] sm:$0xff]
    %v118 = vld [vmem:[#allocation5 + $0x8] sm:$0xff]
    %v119 = vld [vmem:[#allocation7] sm:$0xff]
    %v120 = vld [vmem:[#allocation7 + $0x8] sm:$0xff]
    %v121 = vld [vmem:[#allocation8] sm:$0xff]
    %v122 = vld [vmem:[#allocation8 + $0x8] sm:$0xff]
    %v123 = vld [vmem:[%s4] sm:$0x1]
    %v125 = vlaneseq
    %v126 = vshrl.u32 %v125, 7
    %v127 = vsub.s32 0, %v126
    %v128 = vrot.slane %v123, %v127
    %vm130 = vcmask 130048
    %v132 = vsel %vm130, %v115, 0
    %v135 = vsel %vm130, %v116, 0
    %137 = vmatprep.subr.mxu0 0.0
    %138 = vmatpush1.msra.mxu0 0.0
    %139 = vmatprep.subr.mxu0 0.0
    %140 = vmatpush1.msra.mxu0 0.0
    %141 = vmatprep.subr.mxu0 0.0
    %142 = vmatpush1.msra.mxu0 0.0
    %143 = vmatprep.subr.mxu0 0.0
    %144 = vmatpush1.msra.mxu0 0.0
    %145 = vmatprep.subr.mxu0 0.0
    %146 = vmatpush1.msra.mxu0 0.0
    %147 = vmatprep.subr.mxu0 0.0
    %148 = vmatpush1.msra.mxu0 0.0
    %149 = vmatprep.subr.mxu0 0.0
    %150 = vmatpush1.msra.mxu0 0.0
    %151 = vmatprep.subr.mxu0 0.0
    %152 = vmatpush1.msra.mxu0 0.0
    %153 = vmatprep.subr.mxu0 0.0
    %154 = vmatpush1.msra.mxu0 0.0
    %155 = vmatprep.subr.mxu0 0.0
    %156 = vmatpush1.msra.mxu0 0.0
    %157 = vmatprep.subr.mxu0 0.0
    %158 = vmatpush1.msra.mxu0 0.0
    %159 = vmatprep.subr.mxu0 0.0
    %160 = vmatpush1.msra.mxu0 0.0
    %161 = vmatprep.subr.mxu0 0.0
    %162 = vmatpush1.msra.mxu0 0.0
    %163 = vmatprep.subr.mxu0 0.0
    %164 = vmatpush1.msra.mxu0 0.0
    %165 = vmatprep.subr.mxu0 0.0
    %166 = vmatpush1.msra.mxu0 %v122
    %167 = vmatprep.subr.mxu0 0.0
    %168 = vmatpush1.msra.mxu0 %v121
    %169 = vmatprep.subr.mxu0 0.0
    %170 = vmatpush2.msra.mxu0 0.0
    %171 = vmatprep.subr.mxu0 0.0
    %172 = vmatpush2.msra.mxu0 0.0
    %173 = vmatprep.subr.mxu0 0.0
    %174 = vmatpush2.msra.mxu0 0.0
    %175 = vmatprep.subr.mxu0 0.0
    %176 = vmatpush2.msra.mxu0 0.0
    %177 = vmatprep.subr.mxu0 0.0
    %178 = vmatpush2.msra.mxu0 0.0
    %179 = vmatprep.subr.mxu0 0.0
    %180 = vmatpush2.msra.mxu0 0.0
    %181 = vmatprep.subr.mxu0 0.0
    %182 = vmatpush2.msra.mxu0 0.0
    %183 = vmatprep.subr.mxu0 0.0
    %184 = vmatpush2.msra.mxu0 0.0
    %185 = vmatprep.subr.mxu0 0.0
    %186 = vmatpush2.msra.mxu0 0.0
    %187 = vmatprep.subr.mxu0 0.0
    %188 = vmatpush2.msra.mxu0 0.0
    %189 = vmatprep.subr.mxu0 0.0
    %190 = vmatpush2.msra.mxu0 0.0
    %191 = vmatprep.subr.mxu0 0.0
    %192 = vmatpush2.msra.mxu0 0.0
    %193 = vmatprep.subr.mxu0 0.0
    %194 = vmatpush2.msra.mxu0 0.0
    %195 = vmatprep.subr.mxu0 0.0
    %196 = vmatpush2.msra.mxu0 0.0
    %197 = vmatprep.subr.mxu0 0.0
    %198 = vmatpush2.msra.mxu0 0.0
    %199 = vmatprep.subr.mxu0 0.0
    %200 = vmatpush2.msra.mxu0 0.0
    %201 = vmatprep.mubr.f32.mxu0 0.0
    %202 = vmatmul.mubr.f32.gmra.mxu0 %v132
    %v203 = vpop.f32.mrf.mxu0
    %v204 = vadd.f32 %v128, %v203
    %v205 = vpop.f32.mrf.mxu0
    %206 = vmatprep.mubr.f32.mxu0 0.0
    %207 = vmatmul.mubr.f32.gmra.mxu0 %v135
    %v208 = vpop.f32.mrf.mxu0
    %v209 = vadd.f32 %v128, %v208
    %v210 = vpop.f32.mrf.mxu0
    %211 = vdwg.mxu0
    %v212 = vmul.f32 %v204, 0.17677669
    %v213 = vmul.f32 %v209, 0.17677669
    %v214 = vld [vmem:[#allocation10] sm:$0xff]
    %v215 = vld [vmem:[#allocation10 + $0x8] sm:$0xff]
    %v216 = vld [vmem:[%s6] sm:$0x1]
    %v218 = vlaneseq
    %v219 = vshrl.u32 %v218, 7
    %v220 = vsub.s32 0, %v219
    %v221 = vrot.slane %v216, %v220
    %v224 = vsel %vm130, %v117, 0
    %v227 = vsel %vm130, %v118, 0
    %229 = vmatprep.subr.mxu0 0.0
    %230 = vmatpush1.msra.mxu0 0.0
    %231 = vmatprep.subr.mxu0 0.0
    %232 = vmatpush1.msra.mxu0 0.0
    %233 = vmatprep.subr.mxu0 0.0
    %234 = vmatpush1.msra.mxu0 0.0
    %235 = vmatprep.subr.mxu0 0.0
    %236 = vmatpush1.msra.mxu0 0.0
    %237 = vmatprep.subr.mxu0 0.0
    %238 = vmatpush1.msra.mxu0 0.0
    %239 = vmatprep.subr.mxu0 0.0
    %240 = vmatpush1.msra.mxu0 0.0
    %241 = vmatprep.subr.mxu0 0.0
    %242 = vmatpush1.msra.mxu0 0.0
    %243 = vmatprep.subr.mxu0 0.0
    %244 = vmatpush1.msra.mxu0 0.0
    %245 = vmatprep.subr.mxu0 0.0
    %246 = vmatpush1.msra.mxu0 0.0
    %247 = vmatprep.subr.mxu0 0.0
    %248 = vmatpush1.msra.mxu0 0.0
    %249 = vmatprep.subr.mxu0 0.0
    %250 = vmatpush1.msra.mxu0 0.0
    %251 = vmatprep.subr.mxu0 0.0
    %252 = vmatpush1.msra.mxu0 0.0
    %253 = vmatprep.subr.mxu0 0.0
    %254 = vmatpush1.msra.mxu0 0.0
    %255 = vmatprep.subr.mxu0 0.0
    %256 = vmatpush1.msra.mxu0 0.0
    %257 = vmatprep.subr.mxu0 0.0
    %258 = vmatpush1.msra.mxu0 %v215
    %259 = vmatprep.subr.mxu0 0.0
    %260 = vmatpush1.msra.mxu0 %v214
    %261 = vmatprep.subr.mxu0 0.0
    %262 = vmatpush2.msra.mxu0 0.0
    %263 = vmatprep.subr.mxu0 0.0
    %264 = vmatpush2.msra.mxu0 0.0
    %265 = vmatprep.subr.mxu0 0.0
    %266 = vmatpush2.msra.mxu0 0.0
    %267 = vmatprep.subr.mxu0 0.0
    %268 = vmatpush2.msra.mxu0 0.0
    %269 = vmatprep.subr.mxu0 0.0
    %270 = vmatpush2.msra.mxu0 0.0
    %271 = vmatprep.subr.mxu0 0.0
    %272 = vmatpush2.msra.mxu0 0.0
    %273 = vmatprep.subr.mxu0 0.0
    %274 = vmatpush2.msra.mxu0 0.0
    %275 = vmatprep.subr.mxu0 0.0
    %276 = vmatpush2.msra.mxu0 0.0
    %277 = vmatprep.subr.mxu0 0.0
    %278 = vmatpush2.msra.mxu0 0.0
    %279 = vmatprep.subr.mxu0 0.0
    %280 = vmatpush2.msra.mxu0 0.0
    %281 = vmatprep.subr.mxu0 0.0
    %282 = vmatpush2.msra.mxu0 0.0
    %283 = vmatprep.subr.mxu0 0.0
    %284 = vmatpush2.msra.mxu0 0.0
    %285 = vmatprep.subr.mxu0 0.0
    %286 = vmatpush2.msra.mxu0 0.0
    %287 = vmatprep.subr.mxu0 0.0
    %288 = vmatpush2.msra.mxu0 0.0
    %289 = vmatprep.subr.mxu0 0.0
    %290 = vmatpush2.msra.mxu0 0.0
    %291 = vmatprep.subr.mxu0 0.0
    %292 = vmatpush2.msra.mxu0 0.0
    %293 = vmatprep.mubr.f32.mxu0 0.0
    %294 = vmatmul.mubr.f32.gmra.mxu0 %v224
    %v295 = vpop.f32.mrf.mxu0
    %v296 = vadd.f32 %v221, %v295
    %v297 = vpop.f32.mrf.mxu0
    %298 = vmatprep.mubr.f32.mxu0 0.0
    %299 = vmatmul.mubr.f32.gmra.mxu0 %v227
    %v300 = vpop.f32.mrf.mxu0
    %v301 = vadd.f32 %v221, %v300
    %v302 = vpop.f32.mrf.mxu0
    %303 = vdwg.mxu0
    %v304 = vld [vmem:[#allocation11] sm:$0xff]
    %v305 = vld [vmem:[#allocation11 + $0x8] sm:$0xff]
    %v306 = vld [vmem:[%s8] sm:$0x1]
    %v308 = vlaneseq
    %v309 = vshrl.u32 %v308, 7
    %v310 = vsub.s32 0, %v309
    %v311 = vrot.slane %v306, %v310
    %v314 = vsel %vm130, %v119, 0
    %v317 = vsel %vm130, %v120, 0
    %319 = vmatprep.subr.mxu0 0.0
    %320 = vmatpush1.msra.mxu0 0.0
    %321 = vmatprep.subr.mxu0 0.0
    %322 = vmatpush1.msra.mxu0 0.0
    %323 = vmatprep.subr.mxu0 0.0
    %324 = vmatpush1.msra.mxu0 0.0
    %325 = vmatprep.subr.mxu0 0.0
    %326 = vmatpush1.msra.mxu0 0.0
    %327 = vmatprep.subr.mxu0 0.0
    %328 = vmatpush1.msra.mxu0 0.0
    %329 = vmatprep.subr.mxu0 0.0
    %330 = vmatpush1.msra.mxu0 0.0
    %331 = vmatprep.subr.mxu0 0.0
    %332 = vmatpush1.msra.mxu0 0.0
    %333 = vmatprep.subr.mxu0 0.0
    %334 = vmatpush1.msra.mxu0 0.0
    %335 = vmatprep.subr.mxu0 0.0
    %336 = vmatpush1.msra.mxu0 0.0
    %337 = vmatprep.subr.mxu0 0.0
    %338 = vmatpush1.msra.mxu0 0.0
    %339 = vmatprep.subr.mxu0 0.0
    %340 = vmatpush1.msra.mxu0 0.0
    %341 = vmatprep.subr.mxu0 0.0
    %342 = vmatpush1.msra.mxu0 0.0
    %343 = vmatprep.subr.mxu0 0.0
    %344 = vmatpush1.msra.mxu0 0.0
    %345 = vmatprep.subr.mxu0 0.0
    %346 = vmatpush1.msra.mxu0 0.0
    %347 = vmatprep.subr.mxu0 0.0
    %348 = vmatpush1.msra.mxu0 %v305
    %349 = vmatprep.subr.mxu0 0.0
    %350 = vmatpush1.msra.mxu0 %v304
    %351 = vmatprep.subr.mxu0 0.0
    %352 = vmatpush2.msra.mxu0 0.0
    %353 = vmatprep.subr.mxu0 0.0
    %354 = vmatpush2.msra.mxu0 0.0
    %355 = vmatprep.subr.mxu0 0.0
    %356 = vmatpush2.msra.mxu0 0.0
    %357 = vmatprep.subr.mxu0 0.0
    %358 = vmatpush2.msra.mxu0 0.0
    %359 = vmatprep.subr.mxu0 0.0
    %360 = vmatpush2.msra.mxu0 0.0
    %361 = vmatprep.subr.mxu0 0.0
    %362 = vmatpush2.msra.mxu0 0.0
    %363 = vmatprep.subr.mxu0 0.0
    %364 = vmatpush2.msra.mxu0 0.0
    %365 = vmatprep.subr.mxu0 0.0
    %366 = vmatpush2.msra.mxu0 0.0
    %367 = vmatprep.subr.mxu0 0.0
    %368 = vmatpush2.msra.mxu0 0.0
    %369 = vmatprep.subr.mxu0 0.0
    %370 = vmatpush2.msra.mxu0 0.0
    %371 = vmatprep.subr.mxu0 0.0
    %372 = vmatpush2.msra.mxu0 0.0
    %373 = vmatprep.subr.mxu0 0.0
    %374 = vmatpush2.msra.mxu0 0.0
    %375 = vmatprep.subr.mxu0 0.0
    %376 = vmatpush2.msra.mxu0 0.0
    %377 = vmatprep.subr.mxu0 0.0
    %378 = vmatpush2.msra.mxu0 0.0
    %379 = vmatprep.subr.mxu0 0.0
    %380 = vmatpush2.msra.mxu0 0.0
    %381 = vmatprep.subr.mxu0 0.0
    %382 = vmatpush2.msra.mxu0 0.0
    %383 = vmatprep.mubr.f32.mxu0 0.0
    %384 = vmatmul.mubr.f32.gmra.mxu0 %v314
    %v385 = vpop.f32.mrf.mxu0
    %v386 = vadd.f32 %v311, %v385
    %v387 = vpop.f32.mrf.mxu0
    %388 = vmatprep.mubr.f32.mxu0 0.0
    %389 = vmatmul.mubr.f32.gmra.mxu0 %v317
    %v390 = vpop.f32.mrf.mxu0
    %v391 = vadd.f32 %v311, %v390
    %v392 = vpop.f32.mrf.mxu0
    %393 = vdwg.mxu0
    %394 = vmatprep.subr.mxu0 0.0
    %395 = vmatpush1.xpose.msra.mxu0 0.0
    %396 = vmatprep.subr.mxu0 0.0
    %397 = vmatpush1.xpose.msra.mxu0 0.0
    %398 = vmatprep.subr.mxu0 0.0
    %399 = vmatpush1.xpose.msra.mxu0 0.0
    %400 = vmatprep.subr.mxu0 0.0
    %401 = vmatpush1.xpose.msra.mxu0 0.0
    %402 = vmatprep.subr.mxu0 0.0
    %403 = vmatpush1.xpose.msra.mxu0 0.0
    %404 = vmatprep.subr.mxu0 0.0
    %405 = vmatpush1.xpose.msra.mxu0 0.0
    %406 = vmatprep.subr.mxu0 0.0
    %407 = vmatpush1.xpose.msra.mxu0 0.0
    %408 = vmatprep.subr.mxu0 0.0
    %409 = vmatpush1.xpose.msra.mxu0 0.0
    %410 = vmatprep.subr.mxu0 0.0
    %411 = vmatpush1.xpose.msra.mxu0 0.0
    %412 = vmatprep.subr.mxu0 0.0
    %413 = vmatpush1.xpose.msra.mxu0 0.0
    %414 = vmatprep.subr.mxu0 0.0
    %415 = vmatpush1.xpose.msra.mxu0 0.0
    %416 = vmatprep.subr.mxu0 0.0
    %417 = vmatpush1.xpose.msra.mxu0 0.0
    %418 = vmatprep.subr.mxu0 0.0
    %419 = vmatpush1.xpose.msra.mxu0 0.0
    %420 = vmatprep.subr.mxu0 0.0
    %421 = vmatpush1.xpose.msra.mxu0 0.0
    %422 = vmatprep.subr.mxu0 0.0
    %423 = vmatpush1.xpose.msra.mxu0 0.0
    %424 = vmatprep.subr.mxu0 0.0
    %425 = vmatpush1.xpose.msra.mxu0 %v296
    %426 = vmatprep.subr.mxu0 0.0
    %427 = vmatpush2.xpose.msra.mxu0 0.0
    %428 = vmatprep.subr.mxu0 0.0
    %429 = vmatpush2.xpose.msra.mxu0 0.0
    %430 = vmatprep.subr.mxu0 0.0
    %431 = vmatpush2.xpose.msra.mxu0 0.0
    %432 = vmatprep.subr.mxu0 0.0
    %433 = vmatpush2.xpose.msra.mxu0 0.0
    %434 = vmatprep.subr.mxu0 0.0
    %435 = vmatpush2.xpose.msra.mxu0 0.0
    %436 = vmatprep.subr.mxu0 0.0
    %437 = vmatpush2.xpose.msra.mxu0 0.0
    %438 = vmatprep.subr.mxu0 0.0
    %439 = vmatpush2.xpose.msra.mxu0 0.0
    %440 = vmatprep.subr.mxu0 0.0
    %441 = vmatpush2.xpose.msra.mxu0 0.0
    %442 = vmatprep.subr.mxu0 0.0
    %443 = vmatpush2.xpose.msra.mxu0 0.0
    %444 = vmatprep.subr.mxu0 0.0
    %445 = vmatpush2.xpose.msra.mxu0 0.0
    %446 = vmatprep.subr.mxu0 0.0
    %447 = vmatpush2.xpose.msra.mxu0 0.0
    %448 = vmatprep.subr.mxu0 0.0
    %449 = vmatpush2.xpose.msra.mxu0 0.0
    %450 = vmatprep.subr.mxu0 0.0
    %451 = vmatpush2.xpose.msra.mxu0 0.0
    %452 = vmatprep.subr.mxu0 0.0
    %453 = vmatpush2.xpose.msra.mxu0 0.0
    %454 = vmatprep.subr.mxu0 0.0
    %455 = vmatpush2.xpose.msra.mxu0 0.0
    %456 = vmatprep.subr.mxu0 0.0
    %457 = vmatpush2.xpose.msra.mxu0 0.0
    %458 = vmatprep.mubr.f32.mxu0 0.0
    %459 = vmatmul.mubr.f32.gmra.mxu0 %v212
    %v460 = vpop.f32.mrf.mxu0
    %v461 = vadd.f32 0.0, %v460
    %v462 = vpop.f32.mrf.mxu0
    %463 = vdwg.mxu0
    %464 = vmatprep.subr.mxu0 0.0
    %465 = vmatpush1.xpose.msra.mxu0 0.0
    %466 = vmatprep.subr.mxu0 0.0
    %467 = vmatpush1.xpose.msra.mxu0 0.0
    %468 = vmatprep.subr.mxu0 0.0
    %469 = vmatpush1.xpose.msra.mxu0 0.0
    %470 = vmatprep.subr.mxu0 0.0
    %471 = vmatpush1.xpose.msra.mxu0 0.0
    %472 = vmatprep.subr.mxu0 0.0
    %473 = vmatpush1.xpose.msra.mxu0 0.0
    %474 = vmatprep.subr.mxu0 0.0
    %475 = vmatpush1.xpose.msra.mxu0 0.0
    %476 = vmatprep.subr.mxu0 0.0
    %477 = vmatpush1.xpose.msra.mxu0 0.0
    %478 = vmatprep.subr.mxu0 0.0
    %479 = vmatpush1.xpose.msra.mxu0 0.0
    %480 = vmatprep.subr.mxu0 0.0
    %481 = vmatpush1.xpose.msra.mxu0 0.0
    %482 = vmatprep.subr.mxu0 0.0
    %483 = vmatpush1.xpose.msra.mxu0 0.0
    %484 = vmatprep.subr.mxu0 0.0
    %485 = vmatpush1.xpose.msra.mxu0 0.0
    %486 = vmatprep.subr.mxu0 0.0
    %487 = vmatpush1.xpose.msra.mxu0 0.0
    %488 = vmatprep.subr.mxu0 0.0
    %489 = vmatpush1.xpose.msra.mxu0 0.0
    %490 = vmatprep.subr.mxu0 0.0
    %491 = vmatpush1.xpose.msra.mxu0 0.0
    %492 = vmatprep.subr.mxu0 0.0
    %493 = vmatpush1.xpose.msra.mxu0 0.0
    %494 = vmatprep.subr.mxu0 0.0
    %495 = vmatpush1.xpose.msra.mxu0 %v301
    %496 = vmatprep.subr.mxu0 0.0
    %497 = vmatpush2.xpose.msra.mxu0 0.0
    %498 = vmatprep.subr.mxu0 0.0
    %499 = vmatpush2.xpose.msra.mxu0 0.0
    %500 = vmatprep.subr.mxu0 0.0
    %501 = vmatpush2.xpose.msra.mxu0 0.0
    %502 = vmatprep.subr.mxu0 0.0
    %503 = vmatpush2.xpose.msra.mxu0 0.0
    %504 = vmatprep.subr.mxu0 0.0
    %505 = vmatpush2.xpose.msra.mxu0 0.0
    %506 = vmatprep.subr.mxu0 0.0
    %507 = vmatpush2.xpose.msra.mxu0 0.0
    %508 = vmatprep.subr.mxu0 0.0
    %509 = vmatpush2.xpose.msra.mxu0 0.0
    %510 = vmatprep.subr.mxu0 0.0
    %511 = vmatpush2.xpose.msra.mxu0 0.0
    %512 = vmatprep.subr.mxu0 0.0
    %513 = vmatpush2.xpose.msra.mxu0 0.0
    %514 = vmatprep.subr.mxu0 0.0
    %515 = vmatpush2.xpose.msra.mxu0 0.0
    %516 = vmatprep.subr.mxu0 0.0
    %517 = vmatpush2.xpose.msra.mxu0 0.0
    %518 = vmatprep.subr.mxu0 0.0
    %519 = vmatpush2.xpose.msra.mxu0 0.0
    %520 = vmatprep.subr.mxu0 0.0
    %521 = vmatpush2.xpose.msra.mxu0 0.0
    %522 = vmatprep.subr.mxu0 0.0
    %523 = vmatpush2.xpose.msra.mxu0 0.0
    %524 = vmatprep.subr.mxu0 0.0
    %525 = vmatpush2.xpose.msra.mxu0 0.0
    %526 = vmatprep.subr.mxu0 0.0
    %527 = vmatpush2.xpose.msra.mxu0 0.0
    %528 = vmatprep.mubr.f32.mxu0 0.0
    %529 = vmatmul.mubr.f32.gmra.mxu0 %v213
    %v530 = vpop.f32.mrf.mxu0
    %v531 = vadd.f32 0.0, %v530
    %v532 = vpop.f32.mrf.mxu0
    %533 = vdwg.mxu0
    %vm534 = vcmask 64512
    %v535 = vsel %vm534, %v461, -inf
    %536 = vmax.xlane.f32.xlu0 %v535
    %v537 = vpop.xlane.xlu0 %536
    %v538 = vsel %vm534, %v531, -inf
    %539 = vmax.xlane.f32.xlu0 %v538
    %v540 = vpop.xlane.xlu0 %539
    %v541 = vsub.f32 %v461, %v537
    %v542 = vsub.f32 %v531, %v540
    %v543 = vmul.f32 %v541, 1.442695
    %v544 = vpow.pop %v543
    %v545 = vmul.f32 %v542, 1.442695
    %v546 = vpow.pop %v545
    %v547 = vsel %vm534, %v544, 0.0
    %548 = vadd.xlane.f32.xlu0 %v547
    %v549 = vpop.xlane.xlu0 %548
    %v550 = vsel %vm534, %v546, 0.0
    %551 = vadd.xlane.f32.xlu0 %v550
    %v552 = vpop.xlane.xlu0 %551
    %v553 = vrcp.pop %v549
    %v554 = vrcp.pop %v552
    %v555 = vmul.f32 %v544, %v553
    %v556 = vmul.f32 %v546, %v554
    %v558 = vsel %vm534, %v555, 0
    %560 = vmatprep.subr.mxu0 0.0
    %561 = vmatpush1.msra.mxu0 0.0
    %562 = vmatprep.subr.mxu0 0.0
    %563 = vmatpush1.msra.mxu0 0.0
    %564 = vmatprep.subr.mxu0 0.0
    %565 = vmatpush1.msra.mxu0 0.0
    %566 = vmatprep.subr.mxu0 0.0
    %567 = vmatpush1.msra.mxu0 0.0
    %568 = vmatprep.subr.mxu0 0.0
    %569 = vmatpush1.msra.mxu0 0.0
    %570 = vmatprep.subr.mxu0 0.0
    %571 = vmatpush1.msra.mxu0 0.0
    %572 = vmatprep.subr.mxu0 0.0
    %573 = vmatpush1.msra.mxu0 0.0
    %574 = vmatprep.subr.mxu0 0.0
    %575 = vmatpush1.msra.mxu0 0.0
    %576 = vmatprep.subr.mxu0 0.0
    %577 = vmatpush1.msra.mxu0 0.0
    %578 = vmatprep.subr.mxu0 0.0
    %579 = vmatpush1.msra.mxu0 0.0
    %580 = vmatprep.subr.mxu0 0.0
    %581 = vmatpush1.msra.mxu0 0.0
    %582 = vmatprep.subr.mxu0 0.0
    %583 = vmatpush1.msra.mxu0 0.0
    %584 = vmatprep.subr.mxu0 0.0
    %585 = vmatpush1.msra.mxu0 0.0
    %586 = vmatprep.subr.mxu0 0.0
    %587 = vmatpush1.msra.mxu0 0.0
    %588 = vmatprep.subr.mxu0 0.0
    %589 = vmatpush1.msra.mxu0 0.0
    %590 = vmatprep.subr.mxu0 0.0
    %591 = vmatpush1.msra.mxu0 %v386
    %592 = vmatprep.subr.mxu0 0.0
    %593 = vmatpush2.msra.mxu0 0.0
    %594 = vmatprep.subr.mxu0 0.0
    %595 = vmatpush2.msra.mxu0 0.0
    %596 = vmatprep.subr.mxu0 0.0
    %597 = vmatpush2.msra.mxu0 0.0
    %598 = vmatprep.subr.mxu0 0.0
    %599 = vmatpush2.msra.mxu0 0.0
    %600 = vmatprep.subr.mxu0 0.0
    %601 = vmatpush2.msra.mxu0 0.0
    %602 = vmatprep.subr.mxu0 0.0
    %603 = vmatpush2.msra.mxu0 0.0
    %604 = vmatprep.subr.mxu0 0.0
    %605 = vmatpush2.msra.mxu0 0.0
    %606 = vmatprep.subr.mxu0 0.0
    %607 = vmatpush2.msra.mxu0 0.0
    %608 = vmatprep.subr.mxu0 0.0
    %609 = vmatpush2.msra.mxu0 0.0
    %610 = vmatprep.subr.mxu0 0.0
    %611 = vmatpush2.msra.mxu0 0.0
    %612 = vmatprep.subr.mxu0 0.0
    %613 = vmatpush2.msra.mxu0 0.0
    %614 = vmatprep.subr.mxu0 0.0
    %615 = vmatpush2.msra.mxu0 0.0
    %616 = vmatprep.subr.mxu0 0.0
    %617 = vmatpush2.msra.mxu0 0.0
    %618 = vmatprep.subr.mxu0 0.0
    %619 = vmatpush2.msra.mxu0 0.0
    %620 = vmatprep.subr.mxu0 0.0
    %621 = vmatpush2.msra.mxu0 0.0
    %622 = vmatprep.subr.mxu0 0.0
    %623 = vmatpush2.msra.mxu0 0.0
    %624 = vmatprep.mubr.f32.mxu0 0.0
    %625 = vmatmul.mubr.f32.gmra.mxu0 %v558
    %v626 = vpop.f32.mrf.mxu0
    %v627 = vadd.f32 0.0, %v626
    %v628 = vpop.f32.mrf.mxu0
    %629 = vdwg.mxu0
    %v631 = vsel %vm534, %v556, 0
    %633 = vmatprep.subr.mxu0 0.0
    %634 = vmatpush1.msra.mxu0 0.0
    %635 = vmatprep.subr.mxu0 0.0
    %636 = vmatpush1.msra.mxu0 0.0
    %637 = vmatprep.subr.mxu0 0.0
    %638 = vmatpush1.msra.mxu0 0.0
    %639 = vmatprep.subr.mxu0 0.0
    %640 = vmatpush1.msra.mxu0 0.0
    %641 = vmatprep.subr.mxu0 0.0
    %642 = vmatpush1.msra.mxu0 0.0
    %643 = vmatprep.subr.mxu0 0.0
    %644 = vmatpush1.msra.mxu0 0.0
    %645 = vmatprep.subr.mxu0 0.0
    %646 = vmatpush1.msra.mxu0 0.0
    %647 = vmatprep.subr.mxu0 0.0
    %648 = vmatpush1.msra.mxu0 0.0
    %649 = vmatprep.subr.mxu0 0.0
    %650 = vmatpush1.msra.mxu0 0.0
    %651 = vmatprep.subr.mxu0 0.0
    %652 = vmatpush1.msra.mxu0 0.0
    %653 = vmatprep.subr.mxu0 0.0
    %654 = vmatpush1.msra.mxu0 0.0
    %655 = vmatprep.subr.mxu0 0.0
    %656 = vmatpush1.msra.mxu0 0.0
    %657 = vmatprep.subr.mxu0 0.0
    %658 = vmatpush1.msra.mxu0 0.0
    %659 = vmatprep.subr.mxu0 0.0
    %660 = vmatpush1.msra.mxu0 0.0
    %661 = vmatprep.subr.mxu0 0.0
    %662 = vmatpush1.msra.mxu0 0.0
    %663 = vmatprep.subr.mxu0 0.0
    %664 = vmatpush1.msra.mxu0 %v391
    %665 = vmatprep.subr.mxu0 0.0
    %666 = vmatpush2.msra.mxu0 0.0
    %667 = vmatprep.subr.mxu0 0.0
    %668 = vmatpush2.msra.mxu0 0.0
    %669 = vmatprep.subr.mxu0 0.0
    %670 = vmatpush2.msra.mxu0 0.0
    %671 = vmatprep.subr.mxu0 0.0
    %672 = vmatpush2.msra.mxu0 0.0
    %673 = vmatprep.subr.mxu0 0.0
    %674 = vmatpush2.msra.mxu0 0.0
    %675 = vmatprep.subr.mxu0 0.0
    %676 = vmatpush2.msra.mxu0 0.0
    %677 = vmatprep.subr.mxu0 0.0
    %678 = vmatpush2.msra.mxu0 0.0
    %679 = vmatprep.subr.mxu0 0.0
    %680 = vmatpush2.msra.mxu0 0.0
    %681 = vmatprep.subr.mxu0 0.0
    %682 = vmatpush2.msra.mxu0 0.0
    %683 = vmatprep.subr.mxu0 0.0
    %684 = vmatpush2.msra.mxu0 0.0
    %685 = vmatprep.subr.mxu0 0.0
    %686 = vmatpush2.msra.mxu0 0.0
    %687 = vmatprep.subr.mxu0 0.0
    %688 = vmatpush2.msra.mxu0 0.0
    %689 = vmatprep.subr.mxu0 0.0
    %690 = vmatpush2.msra.mxu0 0.0
    %691 = vmatprep.subr.mxu0 0.0
    %692 = vmatpush2.msra.mxu0 0.0
    %693 = vmatprep.subr.mxu0 0.0
    %694 = vmatpush2.msra.mxu0 0.0
    %695 = vmatprep.subr.mxu0 0.0
    %696 = vmatpush2.msra.mxu0 0.0
    %697 = vmatprep.mubr.f32.mxu0 0.0
    %698 = vmatmul.mubr.f32.gmra.mxu0 %v631
    %v699 = vpop.f32.mrf.mxu0
    %v700 = vadd.f32 0.0, %v699
    %v701 = vpop.f32.mrf.mxu0
    %702 = vdwg.mxu0
    %703 = vst [vmem:[#allocation13] sm:$0xff] %v627
    %704 = vst [vmem:[#allocation13 + $0x8] sm:$0xff] %v700
    // Predicated region
    $region62: #{tpu_custom_call.1} parent=1 // pred_check
      _
    $region63: #{tpu_custom_call.1} parent=1 // pred_check_branch
      %706 = sbr.rel (0) target = $region65
    $region64: #{tpu_custom_call.1} parent=1 // pred_region
      %s708 = ssub.s32 256, 256
      %709 = vsyncadd [#allocation4], %s708
      %s710 = sshll.u32 [#allocation13], 4
      %s711 = int_to_ptr.vmem [resolvable:$true] %s710
      %716 = dma.vmem_to_hbm [thread:$0]  %s711, 256, %s9, [#allocation4], 128, 128, 8
    $region65: #{tpu_custom_call.1} parent=1 // pred_fallthru
      _
    // Predicated region
    $region66: #{tpu_custom_call.1} parent=1 // pred_check
      _
    $region67: #{tpu_custom_call.1} parent=1 // pred_check_branch
      %718 = sbr.rel (0) target = $region69
    $region68: #{tpu_custom_call.1} parent=1 // pred_region
      %719 = dma.done [#allocation4], 256
    $region69: #{tpu_custom_call.1} parent=1 // pred_fallthru
      _
    %720 = vsyncpa [#allocation3], 1
    %721 = vsyncpa [#allocation6], 1
    %722 = vsyncpa [#allocation9], 1
    %723 = vsyncpa [#allocation12], 1
    %724 = vsyncpa [#allocation4], 1

</llo_original>
